<compile_context>
chip_gen: v6e
topology: v6e:2x2x1
jax: 0.10.0
libtpu: 0.0.40
codegen_flags: <defaults>
</compile_context>

<pallas_src>
import jax
import jax.numpy as jnp
from jax import lax
from jax.experimental import pallas as pl
from jax.experimental.pallas import tpu as pltpu


# --------------------------------------------------------------------------
# Kernels
# --------------------------------------------------------------------------
def _encode_decode(x_ref, wenc_ref, benc_ref, wdec_ref, bdec_ref):
    """Shared encode/decode body. Weights arrive pre-transposed in bf16."""
    x = x_ref[...].astype(jnp.float32)            # (TB, D)
    bdec = bdec_ref[...]                          # (1, D)  f32
    benc = benc_ref[...]                          # (1, F)  f32

    # encode: (x - b_dec) @ W_enc^T + b_enc, ReLU.  bf16 MXU operands, f32 acc.
    xc = (x - bdec).astype(jnp.bfloat16)          # (TB, D)
    pre = jnp.dot(xc, wenc_ref[...],              # wenc_ref is (D, F): canonical MxKxN
                  preferred_element_type=jnp.float32) + benc
    f = jnp.maximum(pre, 0.0)                     # (TB, F) f32

    # decode: f @ W_dec^T + b_dec.  wdec_ref is (F, D): canonical MxKxN.
    xhat = jnp.dot(f.astype(jnp.bfloat16), wdec_ref[...],
                   preferred_element_type=jnp.float32) + bdec
    return x, f, xhat


def sae_kernel_stats(x_ref, wenc_ref, benc_ref, wdec_ref, bdec_ref,
                     xhat_ref, stats_ref):
    x, f, xhat = _encode_decode(x_ref, wenc_ref, benc_ref, wdec_ref, bdec_ref)
    xhat_ref[...] = xhat.astype(xhat_ref.dtype)

    # Per-tile partial reductions packed into a lane-dense (8, 128) block:
    #   lane 0: sum((xhat - x)^2)   lane 1: sum(f)   lane 2: count(f > 0)
    # Finalization (divide by B / B*D, sum over tiles) happens in the wrapper so
    # the batch grid axis can stay "parallel".
    diff = xhat - x
    sum_sq = jnp.sum(diff * diff)
    sum_f = jnp.sum(f)                            # f >= 0 post-ReLU: |f| == f
    # TODO(synk): PyTorch's (f > 0).sum(-1).mean() would error on an int tensor;
    # we compute the intended float mean of per-row active counts.
    n_act = jnp.sum((f > 0.0).astype(jnp.float32))

    lane = lax.broadcasted_iota(jnp.int32, (8, 128), 1)
    stats_ref[...] = jnp.where(lane == 0, sum_sq,
                               jnp.where(lane == 1, sum_f,
                                         jnp.where(lane == 2, n_act, 0.0)))


def sae_kernel_plain(x_ref, wenc_ref, benc_ref, wdec_ref, bdec_ref, xhat_ref):
    _, _, xhat = _encode_decode(x_ref, wenc_ref, benc_ref, wdec_ref, bdec_ref)
    xhat_ref[...] = xhat.astype(xhat_ref.dtype)


# --------------------------------------------------------------------------
# Wrapper
# --------------------------------------------------------------------------
def prepare_params(w_enc, b_enc, w_dec, b_dec):
    """One-time param prep: bf16 cast + pre-transpose (hoisted out of forward).

    w_enc: (F, D) nn.Linear weight of the encoder.
    w_dec: (D, F) nn.Linear weight of the decoder.
    """
    return dict(
        wenc_t=jnp.asarray(w_enc, jnp.bfloat16).T,            # (D, F)
        benc=jnp.asarray(b_enc, jnp.float32).reshape(1, -1),   # (1, F)
        wdec_t=jnp.asarray(w_dec, jnp.bfloat16).T,            # (F, D)
        bdec=jnp.asarray(b_dec, jnp.float32).reshape(1, -1),   # (1, D)
    )


def _select_tile_and_vmem(B, D, F, x_bytes, out_bytes):
    """Pick the largest batch tile that fits a per-generation VMEM budget."""
    try:
        info = pltpu.get_tpu_info()
        cap = int(getattr(info, "vmem_capacity_bytes", 64 * 1024 * 1024))
    except Exception:                      # conservative fallback (v7x-sized)
        cap = 64 * 1024 * 1024
    # ~75% of physical VMEM, capped at 100 MiB (=> ~48 MiB on v7x, ~96 MiB on
    # v5e/v6e) so Mosaic internal scratch always has headroom.
    budget = min(int(cap * 0.75), 100 * 1024 * 1024)

    # Fixed residency: bf16 weights (single-buffered), f32 biases, stats blocks,
    # plus generic slack.
    fixed = 2 * 2 * D * F + 4 * (D + F) + 2 * 8 * 128 * 4 + (2 << 20)
    # Per-batch-row: double-buffered x in + x_hat out tiles, plus (TB,F)/(TB,D)
    # f32/bf16 intermediates (pre/f, f_bf16, xc, xhat, diff).
    per_row = 2 * D * x_bytes + 2 * D * out_bytes + 6 * F + 14 * D

    tb = None
    for cand in (1024, 512, 256, 128, 64, 32, 16, 8):
        if B % cand == 0 and fixed + cand * per_row <= budget:
            tb = cand
            break
    if tb is None:
        tb = B                              # tiny batch: single grid step
    footprint = fixed + tb * per_row
    vmem_limit = min(budget, max(32 * 1024 * 1024, int(footprint * 1.25)))
    return tb, vmem_limit


def sparse_autoencoder_forward(x, params, compute_loss=False, compute_ap=False,
                               tb=None, xhat_dtype=None):
    """x: (B, n_embed*4). params: output of prepare_params()."""
    B, D = x.shape
    wenc_t, benc, wdec_t, bdec = (params["wenc_t"], params["benc"],
                                  params["wdec_t"], params["bdec"])
    F = wenc_t.shape[1]
    assert wenc_t.shape == (D, F) and wdec_t.shape == (F, D)

    if xhat_dtype is None:
        # NOTE: pass xhat_dtype=jnp.bfloat16 to halve x_hat writeback traffic
        # if downstream consumers tolerate it (kernel is activation-HBM-bound).
        xhat_dtype = x.dtype

    x_bytes = jnp.dtype(x.dtype).itemsize
    out_bytes = jnp.dtype(xhat_dtype).itemsize
    auto_tb, vmem_limit = _select_tile_and_vmem(B, D, F, x_bytes, out_bytes)
    if tb is None:
        tb = auto_tb
    assert B % tb == 0, f"batch {B} must be divisible by tile {tb}"
    num_tiles = B // tb

    # Constant-index operands: single VMEM buffer (no useless double-buffering).
    resident = dict(pipeline_mode=pl.Buffered(1))
    in_specs = [
        pl.BlockSpec((tb, D), lambda i: (i, 0)),               # x tile (double-buffered)
        pl.BlockSpec((D, F), lambda i: (0, 0), **resident),    # W_enc^T (VMEM-resident)
        pl.BlockSpec((1, F), lambda i: (0, 0), **resident),    # b_enc
        pl.BlockSpec((F, D), lambda i: (0, 0), **resident),    # W_dec^T (VMEM-resident)
        pl.BlockSpec((1, D), lambda i: (0, 0), **resident),    # b_dec
    ]
    compiler_params = pltpu.CompilerParams(
        dimension_semantics=("parallel",),
        vmem_limit_bytes=vmem_limit,
    )

    need_stats = compute_loss or compute_ap
    recon_loss = reg_loss = ap = None

    if need_stats:
        out_shape = (
            jax.ShapeDtypeStruct((B, D), xhat_dtype),                  # x_hat
            jax.ShapeDtypeStruct((num_tiles * 8, 128), jnp.float32),   # partials
        )
        out_specs = [
            pl.BlockSpec((tb, D), lambda i: (i, 0)),
            pl.BlockSpec((8, 128), lambda i: (i, 0)),
        ]
        xhat, stats = pl.pallas_call(
            sae_kernel_stats,
            out_shape=out_shape,
            grid_spec=pltpu.PrefetchScalarGridSpec(
                num_scalar_prefetch=0, grid=(num_tiles,),
                in_specs=in_specs, out_specs=out_specs),
            compiler_params=compiler_params,
        )(x, wenc_t, benc, wdec_t, bdec)

        # Tiny finalization outside the kernel: sum per-tile partials.
        totals = stats.reshape(num_tiles, 8, 128)[:, 0, :].sum(axis=0)
        if compute_loss:
            recon_loss = totals[0] / (B * D)
            reg_loss = totals[1] / B
        if compute_ap:
            ap = totals[2] / B
    else:
        xhat = pl.pallas_call(
            sae_kernel_plain,
            out_shape=jax.ShapeDtypeStruct((B, D), xhat_dtype),
            grid_spec=pltpu.PrefetchScalarGridSpec(
                num_scalar_prefetch=0, grid=(num_tiles,),
                in_specs=in_specs,
                out_specs=pl.BlockSpec((tb, D), lambda i: (i, 0))),
            compiler_params=compiler_params,
        )(x, wenc_t, benc, wdec_t, bdec)

    if compute_ap:
        return xhat, recon_loss, reg_loss, ap
    return xhat, recon_loss, reg_loss


# --------------------------------------------------------------------------
# Pure-JAX reference (mirrors the kernel's bf16-operand / f32-acc matmul path)
# --------------------------------------------------------------------------
def reference_forward(x, w_enc, b_enc, w_dec, b_dec):
    xc = (x - b_dec[None, :]).astype(jnp.bfloat16)
    pre = jnp.dot(xc, w_enc.astype(jnp.bfloat16).T,
                  preferred_element_type=jnp.float32) + b_enc[None, :]
    f = jnp.maximum(pre, 0.0)
    xhat = jnp.dot(f.astype(jnp.bfloat16), w_dec.astype(jnp.bfloat16).T,
                   preferred_element_type=jnp.float32) + b_dec[None, :]
    recon = jnp.mean((xhat - x) ** 2)
    reg = jnp.mean(jnp.sum(jnp.abs(f), axis=-1))
    ap = jnp.mean(jnp.sum((f > 0).astype(jnp.float32), axis=-1))
    return xhat, recon, reg, ap


if __name__ == "__main__":
    # SparseAutoencoder(n_features=256, n_embed=32) -> d_in = n_embed*4 = 128
    n_embed = 32
    n_features = 256
    d_in = n_embed * 4
    batch = 256

    key = jax.random.PRNGKey(0)
    k_x, k_we, k_be, k_wd, k_bd = jax.random.split(key, 5)

    x = jax.random.normal(k_x, (batch, d_in), dtype=jnp.float32)
    # nn.Linear-style deterministic init (scaled uniform)
    w_enc = jax.random.uniform(k_we, (n_features, d_in), jnp.float32,
                               -1.0, 1.0) / jnp.sqrt(d_in)
    b_enc = jax.random.uniform(k_be, (n_features,), jnp.float32,
                               -1.0, 1.0) / jnp.sqrt(d_in)
    w_dec = jax.random.uniform(k_wd, (d_in, n_features), jnp.float32,
                               -1.0, 1.0) / jnp.sqrt(n_features)
    b_dec = jax.random.uniform(k_bd, (d_in,), jnp.float32,
                               -1.0, 1.0) / jnp.sqrt(n_features)

    # One-time kernel-ready params (bf16 + pre-transposed), reused across calls.
    params = prepare_params(w_enc, b_enc, w_dec, b_dec)

    # 1) Training-style call (losses + ap), tb=128 exercises a multi-step grid.
    xhat, recon_loss, reg_loss, ap = jax.block_until_ready(
        sparse_autoencoder_forward(x, params, compute_loss=True,
                                   compute_ap=True, tb=128))

    # 2) Inference-only call: stats-free kernel, auto tile selection.
    xhat2, rl2, rg2 = sparse_autoencoder_forward(x, params)
    xhat2 = jax.block_until_ready(xhat2)
    assert rl2 is None and rg2 is None

    xhat_ref, recon_ref, reg_ref, ap_ref = reference_forward(
        x, w_enc, b_enc, w_dec, b_dec)

    assert jnp.allclose(xhat, xhat_ref, atol=1e-3, rtol=1e-3)
    assert jnp.allclose(xhat2, xhat_ref, atol=1e-3, rtol=1e-3)
    assert jnp.allclose(recon_loss, recon_ref, atol=1e-3, rtol=1e-3)
    assert jnp.allclose(reg_loss, reg_ref, atol=1e-2, rtol=1e-3)
    # Numerics contract: ap counts sign of near-zero pre-activations under bf16
    # MXU rounding, so allow a small absolute slack vs. the f32 reference.
    assert jnp.abs(ap - ap_ref) <= 0.25

    print("KERNEL_OK")
</pallas_src>

<mosaic_0001>
module attributes {stable_mosaic.version = 11 : i64} {
  func.func @sae_kernel_stats(%arg0: i32, %arg1: memref<128x128xf32, #tpu.memory_space<vmem>>, %arg2: memref<128x256xbf16, #tpu.memory_space<vmem>>, %arg3: memref<1x256xf32, #tpu.memory_space<vmem>>, %arg4: memref<256x128xbf16, #tpu.memory_space<vmem>>, %arg5: memref<1x128xf32, #tpu.memory_space<vmem>>, %arg6: memref<128x128xf32, #tpu.memory_space<vmem>>, %arg7: memref<8x128xf32, #tpu.memory_space<vmem>>) attributes {dimension_semantics = [#tpu.dimension_semantics<parallel>], iteration_bounds = array<i64: 2>, scalar_prefetch = 0 : i64, scratch_operands = 0 : i64, tpu.core_type = #tpu.core_type<tc>, window_params = [{transform_indices = @transform_0, window_bounds = array<i64: 128, 128>}, {pipeline_mode = #tpu.pipeline_mode<synchronous>, transform_indices = @transform_1, window_bounds = array<i64: 128, 256>}, {pipeline_mode = #tpu.pipeline_mode<synchronous>, transform_indices = @transform_2, window_bounds = array<i64: 1, 256>}, {pipeline_mode = #tpu.pipeline_mode<synchronous>, transform_indices = @transform_3, window_bounds = array<i64: 256, 128>}, {pipeline_mode = #tpu.pipeline_mode<synchronous>, transform_indices = @transform_4, window_bounds = array<i64: 1, 128>}, {transform_indices = @transform_5, window_bounds = array<i64: 128, 128>}, {transform_indices = @transform_6, window_bounds = array<i64: 8, 128>}]} {
    %c0 = arith.constant 0 : index
    %c0_0 = arith.constant 0 : index
    %0 = vector.load %arg1[%c0, %c0_0] : memref<128x128xf32, #tpu.memory_space<vmem>>, vector<128x128xf32>
    %c0_1 = arith.constant 0 : index
    %c0_2 = arith.constant 0 : index
    %1 = vector.load %arg5[%c0_1, %c0_2] : memref<1x128xf32, #tpu.memory_space<vmem>>, vector<1x128xf32>
    %c0_3 = arith.constant 0 : index
    %c0_4 = arith.constant 0 : index
    %2 = vector.load %arg3[%c0_3, %c0_4] : memref<1x256xf32, #tpu.memory_space<vmem>>, vector<1x256xf32>
    %3 = vector.broadcast %1 : vector<1x128xf32> to vector<128x128xf32>
    %4 = arith.subf %0, %3 : vector<128x128xf32>
    %5 = arith.truncf %4 : vector<128x128xf32> to vector<128x128xbf16>
    %c0_5 = arith.constant 0 : index
    %c0_6 = arith.constant 0 : index
    %6 = vector.load %arg2[%c0_5, %c0_6] : memref<128x256xbf16, #tpu.memory_space<vmem>>, vector<128x256xbf16>
    %cst = arith.constant dense<0.000000e+00> : vector<128x256xf32>
    %7 = tpu.matmul %5, %6, %cst {dimension_numbers = #tpu.dot_dimension_numbers<[1], [0], [0], [1], [0, 0, 1, 1], [], []>} : vector<128x128xbf16>, vector<128x256xbf16>, vector<128x256xf32> -> vector<128x256xf32>
    %8 = vector.broadcast %2 : vector<1x256xf32> to vector<128x256xf32>
    %9 = arith.addf %7, %8 : vector<128x256xf32>
    %cst_7 = arith.constant 0.000000e+00 : f32
    %10 = vector.broadcast %cst_7 : f32 to vector<128x256xf32>
    %11 = arith.maximumf %9, %10 : vector<128x256xf32>
    %12 = arith.truncf %11 : vector<128x256xf32> to vector<128x256xbf16>
    %c0_8 = arith.constant 0 : index
    %c0_9 = arith.constant 0 : index
    %13 = vector.load %arg4[%c0_8, %c0_9] : memref<256x128xbf16, #tpu.memory_space<vmem>>, vector<256x128xbf16>
    %cst_10 = arith.constant dense<0.000000e+00> : vector<128x128xf32>
    %14 = tpu.matmul %12, %13, %cst_10 {dimension_numbers = #tpu.dot_dimension_numbers<[1], [0], [0], [1], [0, 0, 1, 1], [], []>} : vector<128x256xbf16>, vector<256x128xbf16>, vector<128x128xf32> -> vector<128x128xf32>
    %15 = vector.broadcast %1 : vector<1x128xf32> to vector<128x128xf32>
    %16 = arith.addf %14, %15 : vector<128x128xf32>
    %c0_11 = arith.constant 0 : index
    %c0_12 = arith.constant 0 : index
    %17 = vector.load %arg6[%c0_11, %c0_12] : memref<128x128xf32, #tpu.memory_space<vmem>>, vector<128x128xf32>
    tpu.vector_store %arg6[%c0_11, %c0_12], %16 {strides = array<i32>} : memref<128x128xf32, #tpu.memory_space<vmem>>, vector<128x128xf32>,
    %18 = arith.subf %16, %0 : vector<128x128xf32>
    %19 = arith.mulf %18, %18 : vector<128x128xf32>
    %20 = vector.shape_cast %19 : vector<128x128xf32> to vector<1x128x128xf32>
    %cst_13 = arith.constant dense<0.000000e+00> : vector<1xf32>
    %21 = vector.multi_reduction <add>, %20, %cst_13 [1, 2] : vector<1x128x128xf32> to vector<1xf32>
    %22 = vector.shape_cast %21 : vector<1xf32> to vector<1x1x1xf32>
    %23 = vector.extract %22[0, 0, 0] : f32 from vector<1x1x1xf32>
    %24 = vector.shape_cast %11 : vector<128x256xf32> to vector<1x128x256xf32>
    %cst_14 = arith.constant dense<0.000000e+00> : vector<1xf32>
    %25 = vector.multi_reduction <add>, %24, %cst_14 [1, 2] : vector<1x128x256xf32> to vector<1xf32>
    %26 = vector.shape_cast %25 : vector<1xf32> to vector<1x1x1xf32>
    %27 = vector.extract %26[0, 0, 0] : f32 from vector<1x1x1xf32>
    %cst_15 = arith.constant 0.000000e+00 : f32
    %28 = vector.broadcast %cst_15 : f32 to vector<128x256xf32>
    %29 = arith.cmpf ogt, %11, %28 : vector<128x256xf32>
    %30 = arith.extui %29 : vector<128x256xi1> to vector<128x256xi32>
    %31 = arith.sitofp %30 : vector<128x256xi32> to vector<128x256xf32>
    %32 = vector.shape_cast %31 : vector<128x256xf32> to vector<1x128x256xf32>
    %cst_16 = arith.constant dense<0.000000e+00> : vector<1xf32>
    %33 = vector.multi_reduction <add>, %32, %cst_16 [1, 2] : vector<1x128x256xf32> to vector<1xf32>
    %34 = vector.shape_cast %33 : vector<1xf32> to vector<1x1x1xf32>
    %35 = vector.extract %34[0, 0, 0] : f32 from vector<1x1x1xf32>
    %36 = tpu.iota {dimensions = array<i32: 1>} : vector<8x128xi32>
    %c0_i32 = arith.constant 0 : i32
    %37 = vector.broadcast %c0_i32 : i32 to vector<8x128xi32>
    %38 = arith.cmpi eq, %36, %37 : vector<8x128xi32>
    %c1_i32 = arith.constant 1 : i32
    %39 = vector.broadcast %c1_i32 : i32 to vector<8x128xi32>
    %40 = arith.cmpi eq, %36, %39 : vector<8x128xi32>
    %c2_i32 = arith.constant 2 : i32
    %41 = vector.broadcast %c2_i32 : i32 to vector<8x128xi32>
    %42 = arith.cmpi eq, %36, %41 : vector<8x128xi32>
    %cst_17 = arith.constant 0.000000e+00 : f32
    %43 = vector.broadcast %35 : f32 to vector<8x128xf32>
    %44 = vector.broadcast %cst_17 : f32 to vector<8x128xf32>
    %45 = arith.select %42, %43, %44 : vector<8x128xi1>, vector<8x128xf32>
    %46 = vector.broadcast %27 : f32 to vector<8x128xf32>
    %47 = arith.select %40, %46, %45 : vector<8x128xi1>, vector<8x128xf32>
    %48 = vector.broadcast %23 : f32 to vector<8x128xf32>
    %49 = arith.select %38, %48, %47 : vector<8x128xi1>, vector<8x128xf32>
    %c0_18 = arith.constant 0 : index
    %c0_19 = arith.constant 0 : index
    %50 = vector.load %arg7[%c0_18, %c0_19] : memref<8x128xf32, #tpu.memory_space<vmem>>, vector<8x128xf32>
    tpu.vector_store %arg7[%c0_18, %c0_19], %49 {strides = array<i32>} : memref<8x128xf32, #tpu.memory_space<vmem>>, vector<8x128xf32>,
    return
  }
  func.func @transform_0(%arg0: i32) -> (i32, i32) {
    %c0_i32 = arith.constant 0 : i32
    %c0_i32_0 = arith.constant 0 : i32
    return %arg0, %c0_i32 : i32, i32
  }
  func.func @transform_1(%arg0: i32) -> (i32, i32) {
    %c0_i32 = arith.constant 0 : i32
    %c0_i32_0 = arith.constant 0 : i32
    %c0_i32_1 = arith.constant 0 : i32
    return %c0_i32, %c0_i32_0 : i32, i32
  }
  func.func @transform_2(%arg0: i32) -> (i32, i32) {
    %c0_i32 = arith.constant 0 : i32
    %c0_i32_0 = arith.constant 0 : i32
    %c0_i32_1 = arith.constant 0 : i32
    return %c0_i32, %c0_i32_0 : i32, i32
  }
  func.func @transform_3(%arg0: i32) -> (i32, i32) {
    %c0_i32 = arith.constant 0 : i32
    %c0_i32_0 = arith.constant 0 : i32
    %c0_i32_1 = arith.constant 0 : i32
    return %c0_i32, %c0_i32_0 : i32, i32
  }
  func.func @transform_4(%arg0: i32) -> (i32, i32) {
    %c0_i32 = arith.constant 0 : i32
    %c0_i32_0 = arith.constant 0 : i32
    %c0_i32_1 = arith.constant 0 : i32
    return %c0_i32, %c0_i32_0 : i32, i32
  }
  func.func @transform_5(%arg0: i32) -> (i32, i32) {
    %c0_i32 = arith.constant 0 : i32
    %c0_i32_0 = arith.constant 0 : i32
    return %arg0, %c0_i32 : i32, i32
  }
  func.func @transform_6(%arg0: i32) -> (i32, i32) {
    %c0_i32 = arith.constant 0 : i32
    %c0_i32_0 = arith.constant 0 : i32
    return %arg0, %c0_i32 : i32, i32
  }
}

</mosaic_0001>

<llo_original>
// kernel: tpu_custom_call.1
$region0: #{tpu_custom_call.1}
  #allocation0 [shape = 'u32[]', space=smem, size = 0x4, offset = 0x4, fixed_abs, tag = 'smem constant byte address 0x4 - core index']
  #allocation1 [shape = 'u32[144,128]{1,0:T(1,128)}', space=vmem, size = 0x12000, scoped, tag = 'internal scratch']
  %s0 = inlined_call_operand.hbm [shape: f32[256,128], index: 0, kind: input, shape index: {}]
  %s1 = inlined_call_operand.hbm [shape: bf16[128,256], index: 1, kind: input, shape index: {}]
  %s2 = inlined_call_operand.vmem [shape: f32[1,256], index: 2, kind: input, shape index: {}]
  %s3 = inlined_call_operand.hbm [shape: bf16[256,128], index: 3, kind: input, shape index: {}]
  %s4 = inlined_call_operand.vmem [shape: f32[1,128], index: 4, kind: input, shape index: {}]
  %s5 = inlined_call_operand.hbm [shape: f32[256,128], index: 5, kind: output, shape index: {0}]
  %s6 = inlined_call_operand.hbm [shape: f32[16,128], index: 6, kind: output, shape index: {1}]
  %7 = xla_tuple %s5, %s6
  %s8 = sld [smem:[#allocation0]]
  $region73: #{tpu_custom_call.1} parent=0
    _
  %s10 = ssub.s32 1, %s8
  %s11 = scalar_select 0, %s10, %s8
  $region1: #{tpu_custom_call.1} parent=0
    #allocation2 [shape = 'u8[131072]{0}', space=vmem, size = 0x20000, scoped, tag = 'input window, operand 0']
    #allocation3 [shape = 's32[2]{0}', space=sflag, size = 0x8, scoped, tag = 'scoped memory for tpu_custom_call.1']
    #allocation4 [shape = 's32[2]{0}', space=sflag, size = 0x8, scoped, tag = 'scoped memory for tpu_custom_call.1']
    #allocation5 [shape = 'u8[65536]{0}', space=vmem, size = 0x10000, scoped, tag = 'input window, operand 1, single buffered']
    #allocation6 [shape = 's32[1]{0}', space=sflag, size = 0x4, scoped, tag = 'scoped memory for tpu_custom_call.1']
    #allocation7 [shape = 'u8[65536]{0}', space=vmem, size = 0x10000, scoped, tag = 'input window, operand 3, single buffered']
    #allocation8 [shape = 'u8[131072]{0}', space=vmem, size = 0x20000, scoped, tag = 'output window, operand 0']
    #allocation9 [shape = 'u8[8192]{0}', space=vmem, size = 0x2000, scoped, tag = 'output window, operand 1']
    #allocation10 [shape = 's32[2]{0}', space=sflag, size = 0x8, scoped, tag = 'scoped memory for tpu_custom_call.1']
    %12 = vsyncpa [#allocation3], 0
    %s13 = scalar_lea.sflag [#allocation3], 1
    %14 = vsyncpa %s13, 0
    %15 = vsyncpa [#allocation6], 0
    %16 = vsyncpa [#allocation4], 0
    %s17 = scalar_lea.sflag [#allocation4], 1
    %18 = vsyncpa %s17, 0
    %19 = vsyncpa [#allocation10], 0
    %s20 = scalar_lea.sflag [#allocation10], 1
    %21 = vsyncpa %s20, 0
    loop: start=0, step=1, limit=4
    $region2: #{tpu_custom_call.1} parent=1 // loop_pre_header
      _
    $region3: #{tpu_custom_call.1} parent=1 // loop_header
      %s23 = sphi 0, %s27
      %p24 = scmp.ge.s32.totalorder %s23, 4
      %s33 = sphi 0, %s35
      %s36 = sphi 0, %s33
      %s37 = sphi 0, %s36
      %s53 = sphi 0, %s37
      %s57 = sphi 0, %s57
      %s59 = sphi 0, %s57
      %s60 = sphi 0, %s59
      %s74 = sphi 0, %s60
      %s78 = sphi 0, %s78
      %s80 = sphi 0, %s78
      %s81 = sphi 0, %s80
      %s95 = sphi 0, %s81
      %s99 = sphi 0, %s99
      %s101 = sphi 0, %s99
      %s102 = sphi 0, %s101
      %s116 = sphi 0, %s102
      %s120 = sphi 0, %s120
      %s122 = sphi 0, %s120
      %s123 = sphi 0, %s122
      %s137 = sphi 0, %s123
      %s143 = sphi 0, %s145
      %s146 = sphi 0, %s143
      %s147 = sphi 0, %s146
      %s163 = sphi 0, %s147
      %s169 = sphi 0, %s171
      %s172 = sphi 0, %s169
      %s173 = sphi 0, %s172
      %s189 = sphi 0, %s173
    $region4: #{tpu_custom_call.1} parent=1 // loop_header_branch
      %26 = sbr.rel (%p24) target = $region8
    $region5: #{tpu_custom_call.1} parent=1 // loop_body
      %s28 = ssub.s32 %s23, 1
      %s29 = ssub.s32 %s23, 2
      %s30 = sadd.s32 %s23, 1
      %s31 = ssub.s32 %s23, %s30
      %p32 = scmp.eq.s32.totalorder %s31, 0
      %s34 = sadd.s32 %s33, 1
      %s35 = scalar_select %p32, %s33, %s34
      %p38 = pneg %p32
      %p39 = scmp.eq.s32.totalorder %s23, 1
      %p40 = por %p38, %p39
      %p41 = scmp.ne.s32.totalorder %s33, %s36
      %p42 = scmp.eq.s32.totalorder %s23, 0
      %p43 = por %p41, %p42
      %p44 = scmp.ne.s32.totalorder %s33, %s36
      %p45 = scmp.eq.s32.totalorder %s28, 1
      %p46 = por %p44, %p45
      %p47 = scmp.ne.s32.totalorder %s36, %s37
      %p48 = scmp.eq.s32.totalorder %s28, 0
      %p49 = por %p47, %p48
      %p50 = scmp.ne.s32.totalorder %s36, %s37
      %p51 = scmp.eq.s32.totalorder %s29, 1
      %p52 = por %p50, %p51
      %p54 = scmp.ne.s32.totalorder %s37, %s53
      %p55 = scmp.eq.s32.totalorder %s29, 0
      %p56 = por %p54, %p55
      %s58 = sadd.s32 %s57, 1
      %p61 = scmp.eq.s32.totalorder %s23, 1
      %p62 = scmp.ne.s32.totalorder %s57, %s59
      %p63 = scmp.eq.s32.totalorder %s23, 0
      %p64 = por %p62, %p63
      %p65 = scmp.ne.s32.totalorder %s57, %s59
      %p66 = scmp.eq.s32.totalorder %s28, 1
      %p67 = por %p65, %p66
      %p68 = scmp.ne.s32.totalorder %s59, %s60
      %p69 = scmp.eq.s32.totalorder %s28, 0
      %p70 = por %p68, %p69
      %p71 = scmp.ne.s32.totalorder %s59, %s60
      %p72 = scmp.eq.s32.totalorder %s29, 1
      %p73 = por %p71, %p72
      %p75 = scmp.ne.s32.totalorder %s60, %s74
      %p76 = scmp.eq.s32.totalorder %s29, 0
      %p77 = por %p75, %p76
      %s79 = sadd.s32 %s78, 1
      %p82 = scmp.eq.s32.totalorder %s23, 1
      %p83 = scmp.ne.s32.totalorder %s78, %s80
      %p84 = scmp.eq.s32.totalorder %s23, 0
      %p85 = por %p83, %p84
      %p86 = scmp.ne.s32.totalorder %s78, %s80
      %p87 = scmp.eq.s32.totalorder %s28, 1
      %p88 = por %p86, %p87
      %p89 = scmp.ne.s32.totalorder %s80, %s81
      %p90 = scmp.eq.s32.totalorder %s28, 0
      %p91 = por %p89, %p90
      %p92 = scmp.ne.s32.totalorder %s80, %s81
      %p93 = scmp.eq.s32.totalorder %s29, 1
      %p94 = por %p92, %p93
      %p96 = scmp.ne.s32.totalorder %s81, %s95
      %p97 = scmp.eq.s32.totalorder %s29, 0
      %p98 = por %p96, %p97
      %s100 = sadd.s32 %s99, 1
      %p103 = scmp.eq.s32.totalorder %s23, 1
      %p104 = scmp.ne.s32.totalorder %s99, %s101
      %p105 = scmp.eq.s32.totalorder %s23, 0
      %p106 = por %p104, %p105
      %p107 = scmp.ne.s32.totalorder %s99, %s101
      %p108 = scmp.eq.s32.totalorder %s28, 1
      %p109 = por %p107, %p108
      %p110 = scmp.ne.s32.totalorder %s101, %s102
      %p111 = scmp.eq.s32.totalorder %s28, 0
      %p112 = por %p110, %p111
      %p113 = scmp.ne.s32.totalorder %s101, %s102
      %p114 = scmp.eq.s32.totalorder %s29, 1
      %p115 = por %p113, %p114
      %p117 = scmp.ne.s32.totalorder %s102, %s116
      %p118 = scmp.eq.s32.totalorder %s29, 0
      %p119 = por %p117, %p118
      %s121 = sadd.s32 %s120, 1
      %p124 = scmp.eq.s32.totalorder %s23, 1
      %p125 = scmp.ne.s32.totalorder %s120, %s122
      %p126 = scmp.eq.s32.totalorder %s23, 0
      %p127 = por %p125, %p126
      %p128 = scmp.ne.s32.totalorder %s120, %s122
      %p129 = scmp.eq.s32.totalorder %s28, 1
      %p130 = por %p128, %p129
      %p131 = scmp.ne.s32.totalorder %s122, %s123
      %p132 = scmp.eq.s32.totalorder %s28, 0
      %p133 = por %p131, %p132
      %p134 = scmp.ne.s32.totalorder %s122, %s123
      %p135 = scmp.eq.s32.totalorder %s29, 1
      %p136 = por %p134, %p135
      %p138 = scmp.ne.s32.totalorder %s123, %s137
      %p139 = scmp.eq.s32.totalorder %s29, 0
      %p140 = por %p138, %p139
      %s141 = ssub.s32 %s23, %s30
      %p142 = scmp.eq.s32.totalorder %s141, 0
      %s144 = sadd.s32 %s143, 1
      %s145 = scalar_select %p142, %s143, %s144
      %p148 = pneg %p142
      %p149 = scmp.eq.s32.totalorder %s23, 1
      %p150 = por %p148, %p149
      %p151 = scmp.ne.s32.totalorder %s143, %s146
      %p152 = scmp.eq.s32.totalorder %s23, 0
      %p153 = por %p151, %p152
      %p154 = scmp.ne.s32.totalorder %s143, %s146
      %p155 = scmp.eq.s32.totalorder %s28, 1
      %p156 = por %p154, %p155
      %p157 = scmp.ne.s32.totalorder %s146, %s147
      %p158 = scmp.eq.s32.totalorder %s28, 0
      %p159 = por %p157, %p158
      %p160 = scmp.ne.s32.totalorder %s146, %s147
      %p161 = scmp.eq.s32.totalorder %s29, 1
      %p162 = por %p160, %p161
      %p164 = scmp.ne.s32.totalorder %s147, %s163
      %p165 = scmp.eq.s32.totalorder %s29, 0
      %p166 = por %p164, %p165
      %s167 = ssub.s32 %s23, %s30
      %p168 = scmp.eq.s32.totalorder %s167, 0
      %s170 = sadd.s32 %s169, 1
      %s171 = scalar_select %p168, %s169, %s170
      %p174 = pneg %p168
      %p175 = scmp.eq.s32.totalorder %s23, 1
      %p176 = por %p174, %p175
      %p177 = scmp.ne.s32.totalorder %s169, %s172
      %p178 = scmp.eq.s32.totalorder %s23, 0
      %p179 = por %p177, %p178
      %p180 = scmp.ne.s32.totalorder %s169, %s172
      %p181 = scmp.eq.s32.totalorder %s28, 1
      %p182 = por %p180, %p181
      %p183 = scmp.ne.s32.totalorder %s172, %s173
      %p184 = scmp.eq.s32.totalorder %s28, 0
      %p185 = por %p183, %p184
      %p186 = scmp.ne.s32.totalorder %s172, %s173
      %p187 = scmp.eq.s32.totalorder %s29, 1
      %p188 = por %p186, %p187
      %p190 = scmp.ne.s32.totalorder %s173, %s189
      %p191 = scmp.eq.s32.totalorder %s29, 0
      %p192 = por %p190, %p191
      %p193 = scmp.le.s32.totalorder 1, %s23
      %p194 = scmp.lt.s32.totalorder %s23, 3
      %p195 = pnand %p193, %p194
      %p196 = pneg %p195
      // Predicated region
      $region9: #{tpu_custom_call.1} parent=5 // pred_check
        _
      $region10: #{tpu_custom_call.1} parent=5 // pred_check_branch
        %198 = sbr.rel (%p195) target = $region12
      $region11: #{tpu_custom_call.1} parent=5 // pred_region
        %s199 = ssub.s32 %s23, 1
        // Predicated region
        $region13: #{tpu_custom_call.1} parent=11 // pred_check
          %p200 = pneg %p70
        $region14: #{tpu_custom_call.1} parent=11 // pred_check_branch
          %202 = sbr.rel (%p200) target = $region16
        $region15: #{tpu_custom_call.1} parent=11 // pred_region
          %s204 = ssub.s32 2048, 2048
          %205 = vsyncadd [#allocation6], %s204
          %s206 = sshll.u32 [#allocation5], 4
          %s207 = int_to_ptr.vmem [resolvable:$true] %s206
          %212 = dma.hbm_to_vmem [thread:$0]  %s1, 2048, %s207, [#allocation6], 128, 128, 8
        $region16: #{tpu_custom_call.1} parent=11 // pred_fallthru
          _
        // Predicated region
        $region17: #{tpu_custom_call.1} parent=11 // pred_check
          %p213 = pneg %p91
        $region18: #{tpu_custom_call.1} parent=11 // pred_check_branch
          %215 = sbr.rel (%p213) target = $region20
        $region19: #{tpu_custom_call.1} parent=11 // pred_region
          _
        $region20: #{tpu_custom_call.1} parent=11 // pred_fallthru
          _
        // Predicated region
        $region21: #{tpu_custom_call.1} parent=11 // pred_check
          %p216 = pneg %p112
        $region22: #{tpu_custom_call.1} parent=11 // pred_check_branch
          %218 = sbr.rel (%p216) target = $region24
        $region23: #{tpu_custom_call.1} parent=11 // pred_region
          %s220 = ssub.s32 2048, 2048
          %221 = vsyncadd [#allocation6], %s220
          %s222 = sshll.u32 [#allocation7], 4
          %s223 = int_to_ptr.vmem [resolvable:$true] %s222
          %228 = dma.hbm_to_vmem [thread:$0]  %s3, 2048, %s223, [#allocation6], 64, 64, 4
        $region24: #{tpu_custom_call.1} parent=11 // pred_fallthru
          _
        // Predicated region
        $region25: #{tpu_custom_call.1} parent=11 // pred_check
          %p229 = pneg %p133
        $region26: #{tpu_custom_call.1} parent=11 // pred_check_branch
          %231 = sbr.rel (%p229) target = $region28
        $region27: #{tpu_custom_call.1} parent=11 // pred_region
          _
        $region28: #{tpu_custom_call.1} parent=11 // pred_fallthru
          _
      $region12: #{tpu_custom_call.1} parent=5 // pred_fallthru
        _
      %p232 = scmp.lt.s32.totalorder %s23, 2
      // Predicated region
      $region29: #{tpu_custom_call.1} parent=5 // pred_check
        %p233 = pneg %p232
      $region30: #{tpu_custom_call.1} parent=5 // pred_check_branch
        %235 = sbr.rel (%p233) target = $region32
      $region31: #{tpu_custom_call.1} parent=5 // pred_region
        // Predicated region
        $region33: #{tpu_custom_call.1} parent=31 // pred_check
          %p236 = pneg %p43
        $region34: #{tpu_custom_call.1} parent=31 // pred_check_branch
          %238 = sbr.rel (%p236) target = $region36
        $region35: #{tpu_custom_call.1} parent=31 // pred_region
          %s239 = sand.u32 %s33, 1
          %s240 = scalar_lea.sflag [#allocation3], %s239
          %s241 = sand.u32 %s33, 1
          %s242 = smul.addr %s241, 128
          %s243 = scalar_lea.vmem [#allocation2], %s242
          %s244 = smul.u32 16, %s23
          %s246 = ssub.s32 2048, 2048
          %247 = vsyncadd %s240, %s246
          %s248 = smul.addr %s244, 128
          %s249 = scalar_lea.hbm %s0, %s248
          %s250 = sshll.u32 %s243, 4
          %s251 = int_to_ptr.vmem [resolvable:$true] %s250
          %256 = dma.hbm_to_vmem [thread:$0]  %s249, 2048, %s251, %s240, 128, 128, 8
        $region36: #{tpu_custom_call.1} parent=31 // pred_fallthru
          _
      $region32: #{tpu_custom_call.1} parent=5 // pred_fallthru
        _
      %p257 = scmp.le.s32.totalorder 1, %s23
      %p258 = scmp.lt.s32.totalorder %s23, 3
      %p259 = pnand %p257, %p258
      %p260 = pneg %p259
      // Predicated region
      $region37: #{tpu_custom_call.1} parent=5 // pred_check
        _
      $region38: #{tpu_custom_call.1} parent=5 // pred_check_branch
        %262 = sbr.rel (%p259) target = $region40
      $region39: #{tpu_custom_call.1} parent=5 // pred_region
        %s263 = ssub.s32 %s23, 1
        %s264 = sand.u32 %s36, 1
        %s265 = scalar_lea.sflag [#allocation3], %s264
        %s266 = sand.u32 %s36, 1
        %s267 = smul.addr %s266, 128
        %s268 = scalar_lea.vmem [#allocation2], %s267
        // Predicated region
        $region41: #{tpu_custom_call.1} parent=39 // pred_check
          %p269 = pneg %p49
        $region42: #{tpu_custom_call.1} parent=39 // pred_check_branch
          %271 = sbr.rel (%p269) target = $region44
        $region43: #{tpu_custom_call.1} parent=39 // pred_region
          %272 = dma.done %s265, 2048
        $region44: #{tpu_custom_call.1} parent=39 // pred_fallthru
          _
        // Predicated region
        $region45: #{tpu_custom_call.1} parent=39 // pred_check
          %p273 = pneg %p70
        $region46: #{tpu_custom_call.1} parent=39 // pred_check_branch
          %275 = sbr.rel (%p273) target = $region48
        $region47: #{tpu_custom_call.1} parent=39 // pred_region
          %276 = dma.done [#allocation6], 2048
        $region48: #{tpu_custom_call.1} parent=39 // pred_fallthru
          _
        // Predicated region
        $region49: #{tpu_custom_call.1} parent=39 // pred_check
          %p277 = pneg %p112
        $region50: #{tpu_custom_call.1} parent=39 // pred_check_branch
          %279 = sbr.rel (%p277) target = $region52
        $region51: #{tpu_custom_call.1} parent=39 // pred_region
          %280 = dma.done [#allocation6], 2048
        $region52: #{tpu_custom_call.1} parent=39 // pred_fallthru
          _
        %s281 = sand.u32 %s36, 1
        %s282 = scalar_lea.sflag [#allocation3], %s281
        %s283 = sand.u32 %s36, 1
        %s284 = smul.addr %s283, 128
        %s285 = scalar_lea.vmem [#allocation2], %s284
        %p286 = pneg %p49
        %p287 = pneg %p46
        %p288 = pneg %p70
        %p289 = pneg %p67
        %p290 = pneg %p91
        %p291 = pneg %p88
        %p292 = pneg %p112
        %p293 = pneg %p109
        %p294 = pneg %p133
        %p295 = pneg %p130
        %p296 = pneg %p159
        %p297 = pneg %p156
        %s298 = sand.u32 %s146, 1
        %s299 = scalar_lea.sflag [#allocation4], %s298
        %s300 = sand.u32 %s146, 1
        %s301 = smul.addr %s300, 128
        %s302 = scalar_lea.vmem [#allocation8], %s301
        %p303 = pneg %p185
        %p304 = pneg %p182
        %s305 = sand.u32 %s172, 1
        %s306 = scalar_lea.sflag [#allocation10], %s305
        %s307 = sand.u32 %s172, 1
        %s308 = smul.addr %s307, 8
        %s309 = scalar_lea.vmem [#allocation9], %s308
        %s310 = smul.u32 16, %s28
        %s311 = smul.u32 16, %s28
        %v313 = vld [vmem:[%s268] sm:$0xff]
        %v314 = vld [vmem:[%s268 + $0x8] sm:$0xff]
        %v315 = vld [vmem:[%s268 + $0x10] sm:$0xff]
        %v316 = vld [vmem:[%s268 + $0x18] sm:$0xff]
        %v317 = vld [vmem:[%s268 + $0x20] sm:$0xff]
        %v318 = vld [vmem:[%s268 + $0x28] sm:$0xff]
        %v319 = vld [vmem:[%s268 + $0x30] sm:$0xff]
        %v320 = vld [vmem:[%s268 + $0x38] sm:$0xff]
        %v321 = vld [vmem:[%s268 + $0x40] sm:$0xff]
        %v322 = vld [vmem:[%s268 + $0x48] sm:$0xff]
        %v323 = vld [vmem:[%s268 + $0x50] sm:$0xff]
        %v324 = vld [vmem:[%s268 + $0x58] sm:$0xff]
        %v325 = vld [vmem:[%s268 + $0x60] sm:$0xff]
        %v326 = vld [vmem:[%s268 + $0x68] sm:$0xff]
        %v327 = vld [vmem:[%s268 + $0x70] sm:$0xff]
        %v328 = vld [vmem:[%s268 + $0x78] sm:$0xff]
        %v329 = vld [vmem:[%s4] sm:$0x1]
        %v330 = vld [vmem:[%s2] sm:$0x3]
        %v332 = vlaneseq
        %v333 = vshrl.u32 %v332, 7
        %v334 = vsub.s32 0, %v333
        %v335 = vrot.slane %v329, %v334
        %v337 = vsub.f32 %v313, %v335
        %v338 = vsub.f32 %v314, %v335
        %v339 = vsub.f32 %v315, %v335
        %v340 = vsub.f32 %v316, %v335
        %v341 = vsub.f32 %v317, %v335
        %v342 = vsub.f32 %v318, %v335
        %v343 = vsub.f32 %v319, %v335
        %v344 = vsub.f32 %v320, %v335
        %v345 = vsub.f32 %v321, %v335
        %v346 = vsub.f32 %v322, %v335
        %v347 = vsub.f32 %v323, %v335
        %v348 = vsub.f32 %v324, %v335
        %v349 = vsub.f32 %v325, %v335
        %v350 = vsub.f32 %v326, %v335
        %v351 = vsub.f32 %v327, %v335
        %v352 = vsub.f32 %v328, %v335
        %v353 = vpack.c.bf16 %v338, %v337
        %v354 = vpack.c.bf16 %v340, %v339
        %v355 = vpack.c.bf16 %v342, %v341
        %v356 = vpack.c.bf16 %v344, %v343
        %v357 = vpack.c.bf16 %v346, %v345
        %v358 = vpack.c.bf16 %v348, %v347
        %v359 = vpack.c.bf16 %v350, %v349
        %v360 = vpack.c.bf16 %v352, %v351
        %v361 = vld [vmem:[#allocation5] sm:$0xff]
        %v362 = vld [vmem:[#allocation5 + $0x8] sm:$0xff]
        %v363 = vld [vmem:[#allocation5 + $0x10] sm:$0xff]
        %v364 = vld [vmem:[#allocation5 + $0x18] sm:$0xff]
        %v365 = vld [vmem:[#allocation5 + $0x20] sm:$0xff]
        %v366 = vld [vmem:[#allocation5 + $0x28] sm:$0xff]
        %v367 = vld [vmem:[#allocation5 + $0x30] sm:$0xff]
        %v368 = vld [vmem:[#allocation5 + $0x38] sm:$0xff]
        %v369 = vld [vmem:[#allocation5 + $0x40] sm:$0xff]
        %v370 = vld [vmem:[#allocation5 + $0x48] sm:$0xff]
        %v371 = vld [vmem:[#allocation5 + $0x50] sm:$0xff]
        %v372 = vld [vmem:[#allocation5 + $0x58] sm:$0xff]
        %v373 = vld [vmem:[#allocation5 + $0x60] sm:$0xff]
        %v374 = vld [vmem:[#allocation5 + $0x68] sm:$0xff]
        %v375 = vld [vmem:[#allocation5 + $0x70] sm:$0xff]
        %v376 = vld [vmem:[#allocation5 + $0x78] sm:$0xff]
        %v378 = vlaneseq
        %v379 = vshrl.u32 %v378, 7
        %v380 = vsub.s32 0, %v379
        %v381 = vrot.slane %v330, %v380
        %v382 = vlaneseq
        %v383 = vshrl.u32 %v382, 7
        %v384 = vsub.s32 1, %v383
        %v385 = vrot.slane %v330, %v384
        %v404 = vunpack.c.l.b16 %v361
        %v405 = vunpack.c.h.b16 %v361
        %v406 = vunpack.c.l.b16 %v362
        %v407 = vunpack.c.h.b16 %v362
        %v408 = vunpack.c.l.b16 %v363
        %v409 = vunpack.c.h.b16 %v363
        %v410 = vunpack.c.l.b16 %v364
        %v411 = vunpack.c.h.b16 %v364
        %v412 = vunpack.c.l.b16 %v365
        %v413 = vunpack.c.h.b16 %v365
        %v414 = vunpack.c.l.b16 %v366
        %v415 = vunpack.c.h.b16 %v366
        %v416 = vunpack.c.l.b16 %v367
        %v417 = vunpack.c.h.b16 %v367
        %v418 = vunpack.c.l.b16 %v368
        %v419 = vunpack.c.h.b16 %v368
        %v420 = vunpack.c.l.b16 %v369
        %v421 = vunpack.c.h.b16 %v369
        %v422 = vunpack.c.l.b16 %v370
        %v423 = vunpack.c.h.b16 %v370
        %v424 = vunpack.c.l.b16 %v371
        %v425 = vunpack.c.h.b16 %v371
        %v426 = vunpack.c.l.b16 %v372
        %v427 = vunpack.c.h.b16 %v372
        %v428 = vunpack.c.l.b16 %v373
        %v429 = vunpack.c.h.b16 %v373
        %v430 = vunpack.c.l.b16 %v374
        %v431 = vunpack.c.h.b16 %v374
        %v432 = vunpack.c.l.b16 %v375
        %v433 = vunpack.c.h.b16 %v375
        %v434 = vunpack.c.l.b16 %v376
        %v435 = vunpack.c.h.b16 %v376
        %v436 = vpack.c.b16 %v406, %v404
        %v437 = vpack.c.b16 %v407, %v405
        %v438 = vpack.c.b16 %v410, %v408
        %v439 = vpack.c.b16 %v411, %v409
        %v440 = vpack.c.b16 %v414, %v412
        %v441 = vpack.c.b16 %v415, %v413
        %v442 = vpack.c.b16 %v418, %v416
        %v443 = vpack.c.b16 %v419, %v417
        %v444 = vpack.c.b16 %v422, %v420
        %v445 = vpack.c.b16 %v423, %v421
        %v446 = vpack.c.b16 %v426, %v424
        %v447 = vpack.c.b16 %v427, %v425
        %v448 = vpack.c.b16 %v430, %v428
        %v449 = vpack.c.b16 %v431, %v429
        %v450 = vpack.c.b16 %v434, %v432
        %v451 = vpack.c.b16 %v435, %v433
        %468 = vmatprep.subr.bf16.mxu0 %v451
        %469 = vmatpush1.bf16.msra.mxu0 %v450
        %470 = vmatprep.subr.bf16.mxu0 %v449
        %471 = vmatpush1.bf16.msra.mxu0 %v448
        %472 = vmatprep.subr.bf16.mxu0 %v447
        %473 = vmatpush1.bf16.msra.mxu0 %v446
        %474 = vmatprep.subr.bf16.mxu0 %v445
        %475 = vmatpush1.bf16.msra.mxu0 %v444
        %476 = vmatprep.subr.bf16.mxu0 %v443
        %477 = vmatpush1.bf16.msra.mxu0 %v442
        %478 = vmatprep.subr.bf16.mxu0 %v441
        %479 = vmatpush1.bf16.msra.mxu0 %v440
        %480 = vmatprep.subr.bf16.mxu0 %v439
        %481 = vmatpush1.bf16.msra.mxu0 %v438
        %482 = vmatprep.subr.bf16.mxu0 %v437
        %483 = vmatpush1.bf16.msra.mxu0 %v436
        %484 = vmatprep.subr.bf16.mxu0 0
        %485 = vmatpush2.bf16.msra.mxu0 0
        %486 = vmatprep.subr.bf16.mxu0 0
        %487 = vmatpush2.bf16.msra.mxu0 0
        %488 = vmatprep.subr.bf16.mxu0 0
        %489 = vmatpush2.bf16.msra.mxu0 0
        %490 = vmatprep.subr.bf16.mxu0 0
        %491 = vmatpush2.bf16.msra.mxu0 0
        %492 = vmatprep.subr.bf16.mxu0 0
        %493 = vmatpush2.bf16.msra.mxu0 0
        %494 = vmatprep.subr.bf16.mxu0 0
        %495 = vmatpush2.bf16.msra.mxu0 0
        %496 = vmatprep.subr.bf16.mxu0 0
        %497 = vmatpush2.bf16.msra.mxu0 0
        %498 = vmatprep.subr.bf16.mxu0 0
        %499 = vmatpush2.bf16.msra.mxu0 0
        %500 = vmatprep.mubr.bf16.mxu0 0
        %501 = vmatmul.mubr.bf16.gmra.mxu0 %v353
        %v502 = vpop.f32.mrf.mxu0
        %v503 = vadd.f32 %v381, %v502
        %v504 = vpop.f32.mrf.mxu0
        %v505 = vadd.f32 %v385, %v504
        %v506 = vpop.f32.mrf.mxu0
        %v507 = vadd.f32 %v381, %v506
        %v508 = vpop.f32.mrf.mxu0
        %v509 = vadd.f32 %v385, %v508
        %510 = vmatprep.mubr.bf16.mxu0 0
        %511 = vmatmul.mubr.bf16.gmra.mxu0 %v354
        %v512 = vpop.f32.mrf.mxu0
        %v513 = vadd.f32 %v381, %v512
        %v514 = vpop.f32.mrf.mxu0
        %v515 = vadd.f32 %v385, %v514
        %v516 = vpop.f32.mrf.mxu0
        %v517 = vadd.f32 %v381, %v516
        %v518 = vpop.f32.mrf.mxu0
        %v519 = vadd.f32 %v385, %v518
        %520 = vmatprep.mubr.bf16.mxu0 0
        %521 = vmatmul.mubr.bf16.gmra.mxu0 %v355
        %v522 = vpop.f32.mrf.mxu0
        %v523 = vadd.f32 %v381, %v522
        %v524 = vpop.f32.mrf.mxu0
        %v525 = vadd.f32 %v385, %v524
        %v526 = vpop.f32.mrf.mxu0
        %v527 = vadd.f32 %v381, %v526
        %v528 = vpop.f32.mrf.mxu0
        %v529 = vadd.f32 %v385, %v528
        %530 = vmatprep.mubr.bf16.mxu0 0
        %531 = vmatmul.mubr.bf16.gmra.mxu0 %v356
        %v532 = vpop.f32.mrf.mxu0
        %v533 = vadd.f32 %v381, %v532
        %v534 = vpop.f32.mrf.mxu0
        %v535 = vadd.f32 %v385, %v534
        %v536 = vpop.f32.mrf.mxu0
        %v537 = vadd.f32 %v381, %v536
        %v538 = vpop.f32.mrf.mxu0
        %v539 = vadd.f32 %v385, %v538
        %540 = vmatprep.mubr.bf16.mxu0 0
        %541 = vmatmul.mubr.bf16.gmra.mxu0 %v357
        %v542 = vpop.f32.mrf.mxu0
        %v543 = vadd.f32 %v381, %v542
        %v544 = vpop.f32.mrf.mxu0
        %v545 = vadd.f32 %v385, %v544
        %v546 = vpop.f32.mrf.mxu0
        %v547 = vadd.f32 %v381, %v546
        %v548 = vpop.f32.mrf.mxu0
        %v549 = vadd.f32 %v385, %v548
        %550 = vmatprep.mubr.bf16.mxu0 0
        %551 = vmatmul.mubr.bf16.gmra.mxu0 %v358
        %v552 = vpop.f32.mrf.mxu0
        %v553 = vadd.f32 %v381, %v552
        %v554 = vpop.f32.mrf.mxu0
        %v555 = vadd.f32 %v385, %v554
        %v556 = vpop.f32.mrf.mxu0
        %v557 = vadd.f32 %v381, %v556
        %v558 = vpop.f32.mrf.mxu0
        %v559 = vadd.f32 %v385, %v558
        %560 = vmatprep.mubr.bf16.mxu0 0
        %561 = vmatmul.mubr.bf16.gmra.mxu0 %v359
        %v562 = vpop.f32.mrf.mxu0
        %v563 = vadd.f32 %v381, %v562
        %v564 = vpop.f32.mrf.mxu0
        %v565 = vadd.f32 %v385, %v564
        %v566 = vpop.f32.mrf.mxu0
        %v567 = vadd.f32 %v381, %v566
        %v568 = vpop.f32.mrf.mxu0
        %v569 = vadd.f32 %v385, %v568
        %570 = vmatprep.mubr.bf16.mxu0 0
        %571 = vmatmul.mubr.bf16.gmra.mxu0 %v360
        %v572 = vpop.f32.mrf.mxu0
        %v573 = vadd.f32 %v381, %v572
        %v574 = vpop.f32.mrf.mxu0
        %v575 = vadd.f32 %v385, %v574
        %v576 = vpop.f32.mrf.mxu0
        %v577 = vadd.f32 %v381, %v576
        %v578 = vpop.f32.mrf.mxu0
        %v579 = vadd.f32 %v385, %v578
        %580 = vdwg.mxu0
        %v581 = vmax.f32 %v503, 0.0
        %v582 = vmax.f32 %v505, 0.0
        %v583 = vmax.f32 %v507, 0.0
        %v584 = vmax.f32 %v509, 0.0
        %v585 = vmax.f32 %v513, 0.0
        %v586 = vmax.f32 %v515, 0.0
        %v587 = vmax.f32 %v517, 0.0
        %v588 = vmax.f32 %v519, 0.0
        %v589 = vmax.f32 %v523, 0.0
        %v590 = vmax.f32 %v525, 0.0
        %v591 = vmax.f32 %v527, 0.0
        %v592 = vmax.f32 %v529, 0.0
        %v593 = vmax.f32 %v533, 0.0
        %v594 = vmax.f32 %v535, 0.0
        %v595 = vmax.f32 %v537, 0.0
        %v596 = vmax.f32 %v539, 0.0
        %v597 = vmax.f32 %v543, 0.0
        %v598 = vmax.f32 %v545, 0.0
        %v599 = vmax.f32 %v547, 0.0
        %v600 = vmax.f32 %v549, 0.0
        %v601 = vmax.f32 %v553, 0.0
        %v602 = vmax.f32 %v555, 0.0
        %v603 = vmax.f32 %v557, 0.0
        %v604 = vmax.f32 %v559, 0.0
        %v605 = vmax.f32 %v563, 0.0
        %v606 = vmax.f32 %v565, 0.0
        %v607 = vmax.f32 %v567, 0.0
        %v608 = vmax.f32 %v569, 0.0
        %v609 = vmax.f32 %v573, 0.0
        %v610 = vmax.f32 %v575, 0.0
        %v611 = vmax.f32 %v577, 0.0
        %v612 = vmax.f32 %v579, 0.0
        %v613 = vpack.c.bf16 %v583, %v581
        %v614 = vpack.c.bf16 %v584, %v582
        %v615 = vpack.c.bf16 %v587, %v585
        %v616 = vpack.c.bf16 %v588, %v586
        %v617 = vpack.c.bf16 %v591, %v589
        %v618 = vpack.c.bf16 %v592, %v590
        %v619 = vpack.c.bf16 %v595, %v593
        %v620 = vpack.c.bf16 %v596, %v594
        %v621 = vpack.c.bf16 %v599, %v597
        %v622 = vpack.c.bf16 %v600, %v598
        %v623 = vpack.c.bf16 %v603, %v601
        %v624 = vpack.c.bf16 %v604, %v602
        %v625 = vpack.c.bf16 %v607, %v605
        %v626 = vpack.c.bf16 %v608, %v606
        %v627 = vpack.c.bf16 %v611, %v609
        %v628 = vpack.c.bf16 %v612, %v610
        %v629 = vld [vmem:[#allocation7] sm:$0xf]
        %v630 = vld [vmem:[#allocation7 + $0x4] sm:$0xf]
        %v631 = vld [vmem:[#allocation7 + $0x8] sm:$0xf]
        %v632 = vld [vmem:[#allocation7 + $0xc] sm:$0xf]
        %v633 = vld [vmem:[#allocation7 + $0x10] sm:$0xf]
        %v634 = vld [vmem:[#allocation7 + $0x14] sm:$0xf]
        %v635 = vld [vmem:[#allocation7 + $0x18] sm:$0xf]
        %v636 = vld [vmem:[#allocation7 + $0x1c] sm:$0xf]
        %v637 = vld [vmem:[#allocation7 + $0x20] sm:$0xf]
        %v638 = vld [vmem:[#allocation7 + $0x24] sm:$0xf]
        %v639 = vld [vmem:[#allocation7 + $0x28] sm:$0xf]
        %v640 = vld [vmem:[#allocation7 + $0x2c] sm:$0xf]
        %v641 = vld [vmem:[#allocation7 + $0x30] sm:$0xf]
        %v642 = vld [vmem:[#allocation7 + $0x34] sm:$0xf]
        %v643 = vld [vmem:[#allocation7 + $0x38] sm:$0xf]
        %v644 = vld [vmem:[#allocation7 + $0x3c] sm:$0xf]
        %v645 = vld [vmem:[#allocation7 + $0x40] sm:$0xf]
        %v646 = vld [vmem:[#allocation7 + $0x44] sm:$0xf]
        %v647 = vld [vmem:[#allocation7 + $0x48] sm:$0xf]
        %v648 = vld [vmem:[#allocation7 + $0x4c] sm:$0xf]
        %v649 = vld [vmem:[#allocation7 + $0x50] sm:$0xf]
        %v650 = vld [vmem:[#allocation7 + $0x54] sm:$0xf]
        %v651 = vld [vmem:[#allocation7 + $0x58] sm:$0xf]
        %v652 = vld [vmem:[#allocation7 + $0x5c] sm:$0xf]
        %v653 = vld [vmem:[#allocation7 + $0x60] sm:$0xf]
        %v654 = vld [vmem:[#allocation7 + $0x64] sm:$0xf]
        %v655 = vld [vmem:[#allocation7 + $0x68] sm:$0xf]
        %v656 = vld [vmem:[#allocation7 + $0x6c] sm:$0xf]
        %v657 = vld [vmem:[#allocation7 + $0x70] sm:$0xf]
        %v658 = vld [vmem:[#allocation7 + $0x74] sm:$0xf]
        %v659 = vld [vmem:[#allocation7 + $0x78] sm:$0xf]
        %v660 = vld [vmem:[#allocation7 + $0x7c] sm:$0xf]
        %v693 = vunpack.c.l.b16 %v629
        %v694 = vunpack.c.l.b16 %v630
        %v695 = vunpack.c.l.b16 %v631
        %v696 = vunpack.c.l.b16 %v632
        %v697 = vunpack.c.l.b16 %v633
        %v698 = vunpack.c.l.b16 %v634
        %v699 = vunpack.c.l.b16 %v635
        %v700 = vunpack.c.l.b16 %v636
        %v701 = vunpack.c.l.b16 %v637
        %v702 = vunpack.c.l.b16 %v638
        %v703 = vunpack.c.l.b16 %v639
        %v704 = vunpack.c.l.b16 %v640
        %v705 = vunpack.c.l.b16 %v641
        %v706 = vunpack.c.l.b16 %v642
        %v707 = vunpack.c.l.b16 %v643
        %v708 = vunpack.c.l.b16 %v644
        %v709 = vunpack.c.l.b16 %v645
        %v710 = vunpack.c.l.b16 %v646
        %v711 = vunpack.c.l.b16 %v647
        %v712 = vunpack.c.l.b16 %v648
        %v713 = vunpack.c.l.b16 %v649
        %v714 = vunpack.c.l.b16 %v650
        %v715 = vunpack.c.l.b16 %v651
        %v716 = vunpack.c.l.b16 %v652
        %v717 = vunpack.c.l.b16 %v653
        %v718 = vunpack.c.l.b16 %v654
        %v719 = vunpack.c.l.b16 %v655
        %v720 = vunpack.c.l.b16 %v656
        %v721 = vunpack.c.l.b16 %v657
        %v722 = vunpack.c.l.b16 %v658
        %v723 = vunpack.c.l.b16 %v659
        %v724 = vunpack.c.l.b16 %v660
        %v725 = vpack.c.b16 %v694, %v693
        %v726 = vpack.c.b16 %v696, %v695
        %v727 = vpack.c.b16 %v698, %v697
        %v728 = vpack.c.b16 %v700, %v699
        %v729 = vpack.c.b16 %v702, %v701
        %v730 = vpack.c.b16 %v704, %v703
        %v731 = vpack.c.b16 %v706, %v705
        %v732 = vpack.c.b16 %v708, %v707
        %v733 = vpack.c.b16 %v710, %v709
        %v734 = vpack.c.b16 %v712, %v711
        %v735 = vpack.c.b16 %v714, %v713
        %v736 = vpack.c.b16 %v716, %v715
        %v737 = vpack.c.b16 %v718, %v717
        %v738 = vpack.c.b16 %v720, %v719
        %v739 = vpack.c.b16 %v722, %v721
        %v740 = vpack.c.b16 %v724, %v723
        %757 = vmatprep.subr.bf16.mxu0 0
        %758 = vmatpush1.bf16.msra.mxu0 %v732
        %759 = vmatprep.subr.bf16.mxu0 0
        %760 = vmatpush1.bf16.msra.mxu0 %v731
        %761 = vmatprep.subr.bf16.mxu0 0
        %762 = vmatpush1.bf16.msra.mxu0 %v730
        %763 = vmatprep.subr.bf16.mxu0 0
        %764 = vmatpush1.bf16.msra.mxu0 %v729
        %765 = vmatprep.subr.bf16.mxu0 0
        %766 = vmatpush1.bf16.msra.mxu0 %v728
        %767 = vmatprep.subr.bf16.mxu0 0
        %768 = vmatpush1.bf16.msra.mxu0 %v727
        %769 = vmatprep.subr.bf16.mxu0 0
        %770 = vmatpush1.bf16.msra.mxu0 %v726
        %771 = vmatprep.subr.bf16.mxu0 0
        %772 = vmatpush1.bf16.msra.mxu0 %v725
        %773 = vmatprep.subr.bf16.mxu0 0
        %774 = vmatpush2.bf16.msra.mxu0 %v740
        %775 = vmatprep.subr.bf16.mxu0 0
        %776 = vmatpush2.bf16.msra.mxu0 %v739
        %777 = vmatprep.subr.bf16.mxu0 0
        %778 = vmatpush2.bf16.msra.mxu0 %v738
        %779 = vmatprep.subr.bf16.mxu0 0
        %780 = vmatpush2.bf16.msra.mxu0 %v737
        %781 = vmatprep.subr.bf16.mxu0 0
        %782 = vmatpush2.bf16.msra.mxu0 %v736
        %783 = vmatprep.subr.bf16.mxu0 0
        %784 = vmatpush2.bf16.msra.mxu0 %v735
        %785 = vmatprep.subr.bf16.mxu0 0
        %786 = vmatpush2.bf16.msra.mxu0 %v734
        %787 = vmatprep.subr.bf16.mxu0 0
        %788 = vmatpush2.bf16.msra.mxu0 %v733
        %789 = vmatprep.mubr.bf16.mxu0 %v614
        %790 = vmatmul.mubr.bf16.gmra.mxu0 %v613
        %v791 = vpop.f32.mrf.mxu0
        %v792 = vadd.f32 %v335, %v791
        %v793 = vpop.f32.mrf.mxu0
        %v794 = vpop.f32.mrf.mxu0
        %v795 = vadd.f32 %v335, %v794
        %v796 = vpop.f32.mrf.mxu0
        %797 = vmatprep.mubr.bf16.mxu0 %v616
        %798 = vmatmul.mubr.bf16.gmra.mxu0 %v615
        %v799 = vpop.f32.mrf.mxu0
        %v800 = vadd.f32 %v335, %v799
        %v801 = vpop.f32.mrf.mxu0
        %v802 = vpop.f32.mrf.mxu0
        %v803 = vadd.f32 %v335, %v802
        %v804 = vpop.f32.mrf.mxu0
        %805 = vmatprep.mubr.bf16.mxu0 %v618
        %806 = vmatmul.mubr.bf16.gmra.mxu0 %v617
        %v807 = vpop.f32.mrf.mxu0
        %v808 = vadd.f32 %v335, %v807
        %v809 = vpop.f32.mrf.mxu0
        %v810 = vpop.f32.mrf.mxu0
        %v811 = vadd.f32 %v335, %v810
        %v812 = vpop.f32.mrf.mxu0
        %813 = vmatprep.mubr.bf16.mxu0 %v620
        %814 = vmatmul.mubr.bf16.gmra.mxu0 %v619
        %v815 = vpop.f32.mrf.mxu0
        %v816 = vadd.f32 %v335, %v815
        %v817 = vpop.f32.mrf.mxu0
        %v818 = vpop.f32.mrf.mxu0
        %v819 = vadd.f32 %v335, %v818
        %v820 = vpop.f32.mrf.mxu0
        %821 = vmatprep.mubr.bf16.mxu0 %v622
        %822 = vmatmul.mubr.bf16.gmra.mxu0 %v621
        %v823 = vpop.f32.mrf.mxu0
        %v824 = vadd.f32 %v335, %v823
        %v825 = vpop.f32.mrf.mxu0
        %v826 = vpop.f32.mrf.mxu0
        %v827 = vadd.f32 %v335, %v826
        %v828 = vpop.f32.mrf.mxu0
        %829 = vmatprep.mubr.bf16.mxu0 %v624
        %830 = vmatmul.mubr.bf16.gmra.mxu0 %v623
        %v831 = vpop.f32.mrf.mxu0
        %v832 = vadd.f32 %v335, %v831
        %v833 = vpop.f32.mrf.mxu0
        %v834 = vpop.f32.mrf.mxu0
        %v835 = vadd.f32 %v335, %v834
        %v836 = vpop.f32.mrf.mxu0
        %837 = vmatprep.mubr.bf16.mxu0 %v626
        %838 = vmatmul.mubr.bf16.gmra.mxu0 %v625
        %v839 = vpop.f32.mrf.mxu0
        %v840 = vadd.f32 %v335, %v839
        %v841 = vpop.f32.mrf.mxu0
        %v842 = vpop.f32.mrf.mxu0
        %v843 = vadd.f32 %v335, %v842
        %v844 = vpop.f32.mrf.mxu0
        %845 = vmatprep.mubr.bf16.mxu0 %v628
        %846 = vmatmul.mubr.bf16.gmra.mxu0 %v627
        %v847 = vpop.f32.mrf.mxu0
        %v848 = vadd.f32 %v335, %v847
        %v849 = vpop.f32.mrf.mxu0
        %v850 = vpop.f32.mrf.mxu0
        %v851 = vadd.f32 %v335, %v850
        %v852 = vpop.f32.mrf.mxu0
        %853 = vdwg.mxu0
        %854 = vst [vmem:[%s302] sm:$0xff] %v792
        %855 = vst [vmem:[%s302 + $0x8] sm:$0xff] %v795
        %856 = vst [vmem:[%s302 + $0x10] sm:$0xff] %v800
        %857 = vst [vmem:[%s302 + $0x18] sm:$0xff] %v803
        %858 = vst [vmem:[%s302 + $0x20] sm:$0xff] %v808
        %859 = vst [vmem:[%s302 + $0x28] sm:$0xff] %v811
        %860 = vst [vmem:[%s302 + $0x30] sm:$0xff] %v816
        %861 = vst [vmem:[%s302 + $0x38] sm:$0xff] %v819
        %862 = vst [vmem:[%s302 + $0x40] sm:$0xff] %v824
        %863 = vst [vmem:[%s302 + $0x48] sm:$0xff] %v827
        %864 = vst [vmem:[%s302 + $0x50] sm:$0xff] %v832
        %865 = vst [vmem:[%s302 + $0x58] sm:$0xff] %v835
        %866 = vst [vmem:[%s302 + $0x60] sm:$0xff] %v840
        %867 = vst [vmem:[%s302 + $0x68] sm:$0xff] %v843
        %868 = vst [vmem:[%s302 + $0x70] sm:$0xff] %v848
        %869 = vst [vmem:[%s302 + $0x78] sm:$0xff] %v851
        %v870 = vsub.f32 %v792, %v313
        %v871 = vsub.f32 %v795, %v314
        %v872 = vsub.f32 %v800, %v315
        %v873 = vsub.f32 %v803, %v316
        %v874 = vsub.f32 %v808, %v317
        %v875 = vsub.f32 %v811, %v318
        %v876 = vsub.f32 %v816, %v319
        %v877 = vsub.f32 %v819, %v320
        %v878 = vsub.f32 %v824, %v321
        %v879 = vsub.f32 %v827, %v322
        %v880 = vsub.f32 %v832, %v323
        %v881 = vsub.f32 %v835, %v324
        %v882 = vsub.f32 %v840, %v325
        %v883 = vsub.f32 %v843, %v326
        %v884 = vsub.f32 %v848, %v327
        %v885 = vsub.f32 %v851, %v328
        %v886 = vmul.f32 %v870, %v870
        %v887 = vmul.f32 %v871, %v871
        %v888 = vmul.f32 %v872, %v872
        %v889 = vmul.f32 %v873, %v873
        %v890 = vmul.f32 %v874, %v874
        %v891 = vmul.f32 %v875, %v875
        %v892 = vmul.f32 %v876, %v876
        %v893 = vmul.f32 %v877, %v877
        %v894 = vmul.f32 %v878, %v878
        %v895 = vmul.f32 %v879, %v879
        %v896 = vmul.f32 %v880, %v880
        %v897 = vmul.f32 %v881, %v881
        %v898 = vmul.f32 %v882, %v882
        %v899 = vmul.f32 %v883, %v883
        %v900 = vmul.f32 %v884, %v884
        %v901 = vmul.f32 %v885, %v885
        %v902 = vadd.f32 %v886, %v887
        %v903 = vadd.f32 %v902, %v888
        %v904 = vadd.f32 %v903, %v889
        %v905 = vadd.f32 %v904, %v890
        %v906 = vadd.f32 %v905, %v891
        %v907 = vadd.f32 %v906, %v892
        %v908 = vadd.f32 %v907, %v893
        %v909 = vadd.f32 %v908, %v894
        %v910 = vadd.f32 %v909, %v895
        %v911 = vadd.f32 %v910, %v896
        %v912 = vadd.f32 %v911, %v897
        %v913 = vadd.f32 %v912, %v898
        %v914 = vadd.f32 %v913, %v899
        %v915 = vadd.f32 %v914, %v900
        %v916 = vadd.f32 %v915, %v901
        %917 = vadd.xlane.f32.xlu0 %v916
        %v918 = vpop.xlane.xlu0 %917
        %v919 = vrot.slane %v918, 4
        %v920 = vadd.f32 %v918, %v919
        %v921 = vrot.slane %v920, 2
        %v922 = vadd.f32 %v920, %v921
        %v923 = vrot.slane %v922, 1
        %v924 = vadd.f32 %v922, %v923
        %s925 = vtos %v924
        %v926 = vadd.f32 %v581, %v582
        %v927 = vadd.f32 %v926, %v583
        %v928 = vadd.f32 %v927, %v584
        %v929 = vadd.f32 %v928, %v585
        %v930 = vadd.f32 %v929, %v586
        %v931 = vadd.f32 %v930, %v587
        %v932 = vadd.f32 %v931, %v588
        %v933 = vadd.f32 %v932, %v589
        %v934 = vadd.f32 %v933, %v590
        %v935 = vadd.f32 %v934, %v591
        %v936 = vadd.f32 %v935, %v592
        %v937 = vadd.f32 %v936, %v593
        %v938 = vadd.f32 %v937, %v594
        %v939 = vadd.f32 %v938, %v595
        %v940 = vadd.f32 %v939, %v596
        %v941 = vadd.f32 %v940, %v597
        %v942 = vadd.f32 %v941, %v598
        %v943 = vadd.f32 %v942, %v599
        %v944 = vadd.f32 %v943, %v600
        %v945 = vadd.f32 %v944, %v601
        %v946 = vadd.f32 %v945, %v602
        %v947 = vadd.f32 %v946, %v603
        %v948 = vadd.f32 %v947, %v604
        %v949 = vadd.f32 %v948, %v605
        %v950 = vadd.f32 %v949, %v606
        %v951 = vadd.f32 %v950, %v607
        %v952 = vadd.f32 %v951, %v608
        %v953 = vadd.f32 %v952, %v609
        %v954 = vadd.f32 %v953, %v610
        %v955 = vadd.f32 %v954, %v611
        %v956 = vadd.f32 %v955, %v612
        %957 = vadd.xlane.f32.xlu0 %v956
        %v958 = vpop.xlane.xlu0 %957
        %v959 = vrot.slane %v958, 4
        %v960 = vadd.f32 %v958, %v959
        %v961 = vrot.slane %v960, 2
        %v962 = vadd.f32 %v960, %v961
        %v963 = vrot.slane %v962, 1
        %v964 = vadd.f32 %v962, %v963
        %s965 = vtos %v964
        %vm966 = vcmp.gt.f32.partialorder %v581, 0.0
        %vm967 = vcmp.gt.f32.partialorder %v582, 0.0
        %vm968 = vcmp.gt.f32.partialorder %v583, 0.0
        %vm969 = vcmp.gt.f32.partialorder %v584, 0.0
        %vm970 = vcmp.gt.f32.partialorder %v585, 0.0
        %vm971 = vcmp.gt.f32.partialorder %v586, 0.0
        %vm972 = vcmp.gt.f32.partialorder %v587, 0.0
        %vm973 = vcmp.gt.f32.partialorder %v588, 0.0
        %vm974 = vcmp.gt.f32.partialorder %v589, 0.0
        %vm975 = vcmp.gt.f32.partialorder %v590, 0.0
        %vm976 = vcmp.gt.f32.partialorder %v591, 0.0
        %vm977 = vcmp.gt.f32.partialorder %v592, 0.0
        %vm978 = vcmp.gt.f32.partialorder %v593, 0.0
        %vm979 = vcmp.gt.f32.partialorder %v594, 0.0
        %vm980 = vcmp.gt.f32.partialorder %v595, 0.0
        %vm981 = vcmp.gt.f32.partialorder %v596, 0.0
        %vm982 = vcmp.gt.f32.partialorder %v597, 0.0
        %vm983 = vcmp.gt.f32.partialorder %v598, 0.0
        %vm984 = vcmp.gt.f32.partialorder %v599, 0.0
        %vm985 = vcmp.gt.f32.partialorder %v600, 0.0
        %vm986 = vcmp.gt.f32.partialorder %v601, 0.0
        %vm987 = vcmp.gt.f32.partialorder %v602, 0.0
        %vm988 = vcmp.gt.f32.partialorder %v603, 0.0
        %vm989 = vcmp.gt.f32.partialorder %v604, 0.0
        %vm990 = vcmp.gt.f32.partialorder %v605, 0.0
        %vm991 = vcmp.gt.f32.partialorder %v606, 0.0
        %vm992 = vcmp.gt.f32.partialorder %v607, 0.0
        %vm993 = vcmp.gt.f32.partialorder %v608, 0.0
        %vm994 = vcmp.gt.f32.partialorder %v609, 0.0
        %vm995 = vcmp.gt.f32.partialorder %v610, 0.0
        %vm996 = vcmp.gt.f32.partialorder %v611, 0.0
        %vm997 = vcmp.gt.f32.partialorder %v612, 0.0
        %v998 = vsel %vm966, 1, 0
        %v999 = vsel %vm967, 1, 0
        %v1000 = vsel %vm968, 1, 0
        %v1001 = vsel %vm969, 1, 0
        %v1002 = vsel %vm970, 1, 0
        %v1003 = vsel %vm971, 1, 0
        %v1004 = vsel %vm972, 1, 0
        %v1005 = vsel %vm973, 1, 0
        %v1006 = vsel %vm974, 1, 0
        %v1007 = vsel %vm975, 1, 0
        %v1008 = vsel %vm976, 1, 0
        %v1009 = vsel %vm977, 1, 0
        %v1010 = vsel %vm978, 1, 0
        %v1011 = vsel %vm979, 1, 0
        %v1012 = vsel %vm980, 1, 0
        %v1013 = vsel %vm981, 1, 0
        %v1014 = vsel %vm982, 1, 0
        %v1015 = vsel %vm983, 1, 0
        %v1016 = vsel %vm984, 1, 0
        %v1017 = vsel %vm985, 1, 0
        %v1018 = vsel %vm986, 1, 0
        %v1019 = vsel %vm987, 1, 0
        %v1020 = vsel %vm988, 1, 0
        %v1021 = vsel %vm989, 1, 0
        %v1022 = vsel %vm990, 1, 0
        %v1023 = vsel %vm991, 1, 0
        %v1024 = vsel %vm992, 1, 0
        %v1025 = vsel %vm993, 1, 0
        %v1026 = vsel %vm994, 1, 0
        %v1027 = vsel %vm995, 1, 0
        %v1028 = vsel %vm996, 1, 0
        %v1029 = vsel %vm997, 1, 0
        %v1030 = vcvt.s32.f32 %v998
        %v1031 = vcvt.s32.f32 %v999
        %v1032 = vcvt.s32.f32 %v1000
        %v1033 = vcvt.s32.f32 %v1001
        %v1034 = vcvt.s32.f32 %v1002
        %v1035 = vcvt.s32.f32 %v1003
        %v1036 = vcvt.s32.f32 %v1004
        %v1037 = vcvt.s32.f32 %v1005
        %v1038 = vcvt.s32.f32 %v1006
        %v1039 = vcvt.s32.f32 %v1007
        %v1040 = vcvt.s32.f32 %v1008
        %v1041 = vcvt.s32.f32 %v1009
        %v1042 = vcvt.s32.f32 %v1010
        %v1043 = vcvt.s32.f32 %v1011
        %v1044 = vcvt.s32.f32 %v1012
        %v1045 = vcvt.s32.f32 %v1013
        %v1046 = vcvt.s32.f32 %v1014
        %v1047 = vcvt.s32.f32 %v1015
        %v1048 = vcvt.s32.f32 %v1016
        %v1049 = vcvt.s32.f32 %v1017
        %v1050 = vcvt.s32.f32 %v1018
        %v1051 = vcvt.s32.f32 %v1019
        %v1052 = vcvt.s32.f32 %v1020
        %v1053 = vcvt.s32.f32 %v1021
        %v1054 = vcvt.s32.f32 %v1022
        %v1055 = vcvt.s32.f32 %v1023
        %v1056 = vcvt.s32.f32 %v1024
        %v1057 = vcvt.s32.f32 %v1025
        %v1058 = vcvt.s32.f32 %v1026
        %v1059 = vcvt.s32.f32 %v1027
        %v1060 = vcvt.s32.f32 %v1028
        %v1061 = vcvt.s32.f32 %v1029
        %v1062 = vadd.f32 %v1030, %v1031
        %v1063 = vadd.f32 %v1062, %v1032
        %v1064 = vadd.f32 %v1063, %v1033
        %v1065 = vadd.f32 %v1064, %v1034
        %v1066 = vadd.f32 %v1065, %v1035
        %v1067 = vadd.f32 %v1066, %v1036
        %v1068 = vadd.f32 %v1067, %v1037
        %v1069 = vadd.f32 %v1068, %v1038
        %v1070 = vadd.f32 %v1069, %v1039
        %v1071 = vadd.f32 %v1070, %v1040
        %v1072 = vadd.f32 %v1071, %v1041
        %v1073 = vadd.f32 %v1072, %v1042
        %v1074 = vadd.f32 %v1073, %v1043
        %v1075 = vadd.f32 %v1074, %v1044
        %v1076 = vadd.f32 %v1075, %v1045
        %v1077 = vadd.f32 %v1076, %v1046
        %v1078 = vadd.f32 %v1077, %v1047
        %v1079 = vadd.f32 %v1078, %v1048
        %v1080 = vadd.f32 %v1079, %v1049
        %v1081 = vadd.f32 %v1080, %v1050
        %v1082 = vadd.f32 %v1081, %v1051
        %v1083 = vadd.f32 %v1082, %v1052
        %v1084 = vadd.f32 %v1083, %v1053
        %v1085 = vadd.f32 %v1084, %v1054
        %v1086 = vadd.f32 %v1085, %v1055
        %v1087 = vadd.f32 %v1086, %v1056
        %v1088 = vadd.f32 %v1087, %v1057
        %v1089 = vadd.f32 %v1088, %v1058
        %v1090 = vadd.f32 %v1089, %v1059
        %v1091 = vadd.f32 %v1090, %v1060
        %v1092 = vadd.f32 %v1091, %v1061
        %1093 = vadd.xlane.f32.xlu0 %v1092
        %v1094 = vpop.xlane.xlu0 %1093
        %v1095 = vrot.slane %v1094, 4
        %v1096 = vadd.f32 %v1094, %v1095
        %v1097 = vrot.slane %v1096, 2
        %v1098 = vadd.f32 %v1096, %v1097
        %v1099 = vrot.slane %v1098, 1
        %v1100 = vadd.f32 %v1098, %v1099
        %s1101 = vtos %v1100
        %v1102 = vlaneseq
        %v1103 = vand.u32 %v1102, 127
        %vm1104 = vcmp.eq.s32.totalorder %v1103, 0
        %vm1105 = vcmp.eq.s32.totalorder %v1103, 1
        %vm1106 = vcmp.eq.s32.totalorder %v1103, 2
        %v1107 = vstv %s1101
        %v1108 = vsel %vm1106, %v1107, 0.0
        %v1109 = vstv %s965
        %v1110 = vsel %vm1105, %v1109, %v1108
        %v1111 = vstv %s925
        %v1112 = vsel %vm1104, %v1111, %v1110
        %1113 = vst [vmem:[%s309] sm:$0xff] %v1112
        %s1114 = sand.u32 %s146, 1
        %s1115 = scalar_lea.sflag [#allocation4], %s1114
        %s1116 = sand.u32 %s146, 1
        %s1117 = smul.addr %s1116, 128
        %s1118 = scalar_lea.vmem [#allocation8], %s1117
        %s1119 = sand.u32 %s172, 1
        %s1120 = scalar_lea.sflag [#allocation10], %s1119
        %s1121 = sand.u32 %s172, 1
        %s1122 = smul.addr %s1121, 8
        %s1123 = scalar_lea.vmem [#allocation9], %s1122
        // Predicated region
        $region53: #{tpu_custom_call.1} parent=39 // pred_check
          %p1124 = pneg %p156
        $region54: #{tpu_custom_call.1} parent=39 // pred_check_branch
          %1126 = sbr.rel (%p1124) target = $region56
        $region55: #{tpu_custom_call.1} parent=39 // pred_region
          %s1127 = smul.u32 16, %s28
          %s1129 = ssub.s32 2048, 2048
          %1130 = vsyncadd %s1115, %s1129
          %s1131 = smul.addr %s1127, 128
          %s1132 = scalar_lea.hbm %s5, %s1131
          %s1133 = sshll.u32 %s1118, 4
          %s1134 = int_to_ptr.vmem [resolvable:$true] %s1133
          %1139 = dma.vmem_to_hbm [thread:$0]  %s1134, 2048, %s1132, %s1115, 128, 128, 8
        $region56: #{tpu_custom_call.1} parent=39 // pred_fallthru
          _
        // Predicated region
        $region57: #{tpu_custom_call.1} parent=39 // pred_check
          %p1140 = pneg %p182
        $region58: #{tpu_custom_call.1} parent=39 // pred_check_branch
          %1142 = sbr.rel (%p1140) target = $region60
        $region59: #{tpu_custom_call.1} parent=39 // pred_region
          %s1144 = ssub.s32 128, 128
          %1145 = vsyncadd %s1120, %s1144
          %s1146 = smul.addr %s28, 128
          %s1147 = scalar_lea.hbm %s6, %s1146
          %s1149 = sshll.u32 %s1123, 4
          %s1150 = int_to_ptr.vmem [resolvable:$true] %s1149
          %1152 = dma.vmem_to_hbm [thread:$0]  %s1150, 128, %s1147, %s1120
        $region60: #{tpu_custom_call.1} parent=39 // pred_fallthru
          _
      $region40: #{tpu_custom_call.1} parent=5 // pred_fallthru
        _
      %p1153 = scmp.le.s32.totalorder 2, %s23
      // Predicated region
      $region61: #{tpu_custom_call.1} parent=5 // pred_check
        %p1154 = pneg %p1153
      $region62: #{tpu_custom_call.1} parent=5 // pred_check_branch
        %1156 = sbr.rel (%p1154) target = $region64
      $region63: #{tpu_custom_call.1} parent=5 // pred_region
        %s1157 = ssub.s32 %s23, 2
        // Predicated region
        $region65: #{tpu_custom_call.1} parent=63 // pred_check
          %p1158 = pneg %p162
        $region66: #{tpu_custom_call.1} parent=63 // pred_check_branch
          %1160 = sbr.rel (%p1158) target = $region68
        $region67: #{tpu_custom_call.1} parent=63 // pred_region
          %s1161 = sand.u32 %s147, 1
          %s1162 = scalar_lea.sflag [#allocation4], %s1161
          %s1163 = sand.u32 %s147, 1
          %s1164 = smul.addr %s1163, 128
          %s1165 = scalar_lea.vmem [#allocation8], %s1164
          %1166 = dma.done %s1162, 2048
        $region68: #{tpu_custom_call.1} parent=63 // pred_fallthru
          _
        // Predicated region
        $region69: #{tpu_custom_call.1} parent=63 // pred_check
          %p1167 = pneg %p188
        $region70: #{tpu_custom_call.1} parent=63 // pred_check_branch
          %1169 = sbr.rel (%p1167) target = $region72
        $region71: #{tpu_custom_call.1} parent=63 // pred_region
          %s1170 = sand.u32 %s173, 1
          %s1171 = scalar_lea.sflag [#allocation10], %s1170
          %s1172 = sand.u32 %s173, 1
          %s1173 = smul.addr %s1172, 8
          %s1174 = scalar_lea.vmem [#allocation9], %s1173
          %1175 = dma.done %s1171, 128
        $region72: #{tpu_custom_call.1} parent=63 // pred_fallthru
          _
      $region64: #{tpu_custom_call.1} parent=5 // pred_fallthru
        _
    $region6: #{tpu_custom_call.1} parent=1 // loop_footer
      %s27 = sadd.s32 1, %s23
    $region7: #{tpu_custom_call.1} parent=1 // loop_footer_branch
      %22 = sbr.rel target = $region3
    $region8: #{tpu_custom_call.1} parent=1 // loop_exit
      _
    %1176 = vsyncpa [#allocation3], 1
    %s1177 = scalar_lea.sflag [#allocation3], 1
    %1178 = vsyncpa %s1177, 1
    %1179 = vsyncpa [#allocation6], 1
    %1180 = vsyncpa [#allocation4], 1
    %s1181 = scalar_lea.sflag [#allocation4], 1
    %1182 = vsyncpa %s1181, 1
    %1183 = vsyncpa [#allocation10], 1
    %s1184 = scalar_lea.sflag [#allocation10], 1
    %1185 = vsyncpa %s1184, 1

</llo_original>
